<compile_context>
chip_gen: v7x
topology: tpu7x:2x2x1
jax: 0.10.0
libtpu: 0.0.40
codegen_flags: <defaults>
</compile_context>

<pallas_src>
import math

import jax
import jax.numpy as jnp
from jax.experimental import pallas as pl
from jax.experimental.pallas import tpu as pltpu


def _offset_scale_kernel(x_ref, gamma_ref, beta_ref, *out_refs):
    # x_ref:     (TM, Dw)  activation tile (lane-dense when possible)
    # gamma_ref: (H,  Dw)  all per-head scales (resident across the grid)
    # beta_ref:  (H,  Dw)  all per-head offsets
    # out_refs:  H refs of shape (TM, Dw), one per head
    x = x_ref[...]
    for k, o_ref in enumerate(out_refs):
        # Slice each head's params inside the loop so only one broadcast pair
        # is live at a time (keeps vreg pressure flat in H).
        g = gamma_ref[k:k + 1, :]
        b = beta_ref[k:k + 1, :]
        o_ref[...] = (x * g + b).astype(o_ref.dtype)


def offset_scale(x, gamma, beta, *,
                 vmem_block_budget_bytes=12 * 1024 * 1024,
                 max_rows_per_tile=4096):
    """x: (..., D); gamma, beta: (H, D). Returns tuple of H arrays shaped like x."""
    orig_shape = x.shape
    D = orig_shape[-1]
    H = gamma.shape[0]
    assert gamma.shape == (H, D) and beta.shape == (H, D)

    M = 1
    for s in orig_shape[:-1]:
        M *= s

    # Compute in the activation dtype (native bf16 VALU on v6e/v7x; avoids a
    # 2x-wide f32 intermediate of the whole tile held across all H heads).
    gamma = gamma.astype(x.dtype)
    beta = beta.astype(x.dtype)

    # --- Lane-dense layout: fold rows into lanes so the last dim is a
    # multiple of 128 (unmasked full-width output stores).
    lane = 128
    lcm = D * lane // math.gcd(D, lane)
    fold = lcm // D
    if fold > 1 and M % fold == 0 and lcm <= 2048:
        Dw = lcm
        M_rows = M // fold
        x2 = x.reshape(M_rows, Dw)
        gamma_w = jnp.tile(gamma, (1, fold))   # lane j -> gamma[h, j % D]
        beta_w = jnp.tile(beta, (1, fold))
    else:
        # Either already a multiple of 128 (fold == 1, lane-dense as-is) or a
        # ragged shape we do not fold. No padding / post-slice here: pad+slice
        # costs up to ~2x HBM traffic on this store-bound op.
        # TODO(synk): when D % 128 != 0 this path takes masked partial stores.
        Dw = D
        M_rows = M
        x2 = x.reshape(M_rows, Dw)
        gamma_w = gamma
        beta_w = beta

    itemsize = jnp.dtype(x.dtype).itemsize
    # Sub-32-bit dtypes pack along sublanes: align row tiles to the packed
    # sublane count (8 for f32, 16 for bf16, 32 for 8-bit dtypes).
    row_align = 8 * max(1, 4 // itemsize)

    # Row-tile size: x + H outputs, each double-buffered, within the budget.
    bytes_per_row = (2 + 2 * H) * Dw * itemsize
    tm = vmem_block_budget_bytes // bytes_per_row
    tm = min(tm, max_rows_per_tile)
    # Guarantee >= 2 grid tiles when there is enough work: lets the row axis
    # shard across both TensorCores on v7x; negligible cost on v5e/v6e.
    if M_rows >= 2 * row_align:
        tm = min(tm, pl.cdiv(M_rows, 2))
    tm = max(row_align, (tm // row_align) * row_align)

    if tm >= M_rows:
        TM = M_rows                       # single tile == full dim
    else:
        TM = tm
    num_tiles = pl.cdiv(M_rows, TM)       # ragged last tile is masked by Pallas

    # Explicit VMEM limit sized from the actual pipelined footprint + headroom.
    # Stays well under v7x's 64 MiB physical VMEM at the default budget.
    block_footprint = (2 + 2 * H) * TM * Dw * itemsize + 4 * H * Dw * itemsize
    vmem_limit = int(min(max(block_footprint + (4 << 20), 16 << 20), 48 << 20))

    row_spec = pl.BlockSpec((TM, Dw), lambda i: (i, 0))
    param_spec = pl.BlockSpec((H, Dw), lambda i: (0, 0))

    cost = pl.CostEstimate(
        flops=2 * H * M * D,
        transcendentals=0,
        bytes_accessed=(1 + H) * M * D * itemsize + 2 * H * D * itemsize,
    )

    outs = pl.pallas_call(
        _offset_scale_kernel,
        out_shape=tuple(
            jax.ShapeDtypeStruct((M_rows, Dw), x.dtype) for _ in range(H)),
        grid_spec=pltpu.PrefetchScalarGridSpec(
            num_scalar_prefetch=0,
            grid=(num_tiles,),
            in_specs=[row_spec, param_spec, param_spec],
            out_specs=tuple(pl.BlockSpec((TM, Dw), lambda i: (i, 0))
                            for _ in range(H)),
        ),
        compiler_params=pltpu.CompilerParams(
            dimension_semantics=("parallel",),
            vmem_limit_bytes=vmem_limit,
        ),
        cost_estimate=cost,
    )(x2, gamma_w, beta_w)

    return tuple(o.reshape(orig_shape) for o in outs)


if __name__ == "__main__":
    # Small shapes consistent with the module: batch=2, seq=8, dim=32, heads=4
    B, N, D, HEADS = 2, 8, 32, 4

    key = jax.random.PRNGKey(0)
    kx, kg, kx2 = jax.random.split(key, 3)

    x = jax.random.normal(kx, (B, N, D), dtype=jnp.float32)
    # Parameter init mirroring the module: gamma ~ N(0, 0.02), beta = 0
    gamma = 0.02 * jax.random.normal(kg, (HEADS, D), dtype=jnp.float32)
    beta = jnp.zeros((HEADS, D), dtype=jnp.float32)

    outs = offset_scale(x, gamma, beta)
    outs = jax.block_until_ready(outs)

    # Reference: out[..., h, d] = x[..., d] * gamma[h, d] + beta[h, d]
    ref = x[..., None, :] * gamma + beta  # (B, N, H, D)
    for h in range(HEADS):
        assert outs[h].shape == (B, N, D)
        assert jnp.allclose(outs[h], ref[..., h, :], atol=1e-6), f"mismatch at head {h}"

    # Second check: exercises the multi-tile grid with a ragged (masked) final
    # row tile (no padding / post-slice in the wrapper).
    x_b = jax.random.normal(kx2, (3, 40, D), dtype=jnp.float32)
    outs_b = jax.block_until_ready(offset_scale(x_b, gamma, beta))
    ref_b = x_b[..., None, :] * gamma + beta
    for h in range(HEADS):
        assert outs_b[h].shape == (3, 40, D)
        assert jnp.allclose(outs_b[h], ref_b[..., h, :], atol=1e-6), f"mismatch at head {h} (ragged)"

    print("KERNEL_OK")
</pallas_src>

<mosaic_0001>
module attributes {stable_mosaic.version = 11 : i64} {
  func.func @_offset_scale_kernel(%arg0: i32, %arg1: memref<4x128xf32, #tpu.memory_space<vmem>>, %arg2: memref<4x128xf32, #tpu.memory_space<vmem>>, %arg3: memref<4x128xf32, #tpu.memory_space<vmem>>, %arg4: memref<4x128xf32, #tpu.memory_space<vmem>>, %arg5: memref<4x128xf32, #tpu.memory_space<vmem>>, %arg6: memref<4x128xf32, #tpu.memory_space<vmem>>, %arg7: memref<4x128xf32, #tpu.memory_space<vmem>>) attributes {dimension_semantics = [#tpu.dimension_semantics<parallel>], iteration_bounds = array<i64: 1>, scalar_prefetch = 0 : i64, scratch_operands = 0 : i64, tpu.core_type = #tpu.core_type<tc>, window_params = [{transform_indices = @transform_0, window_bounds = array<i64: 4, 128>}, {pipeline_mode = #tpu.pipeline_mode<synchronous>, transform_indices = @transform_1, window_bounds = array<i64: 4, 128>}, {pipeline_mode = #tpu.pipeline_mode<synchronous>, transform_indices = @transform_2, window_bounds = array<i64: 4, 128>}, {transform_indices = @transform_3, window_bounds = array<i64: 4, 128>}, {transform_indices = @transform_4, window_bounds = array<i64: 4, 128>}, {transform_indices = @transform_5, window_bounds = array<i64: 4, 128>}, {transform_indices = @transform_6, window_bounds = array<i64: 4, 128>}]} {
    %c0 = arith.constant 0 : index
    %c0_0 = arith.constant 0 : index
    %0 = vector.load %arg1[%c0, %c0_0] : memref<4x128xf32, #tpu.memory_space<vmem>>, vector<4x128xf32>
    %c0_1 = arith.constant 0 : index
    %c0_2 = arith.constant 0 : index
    %1 = vector.load %arg2[%c0_1, %c0_2] : memref<4x128xf32, #tpu.memory_space<vmem>>, vector<1x128xf32>
    %c0_3 = arith.constant 0 : index
    %c0_4 = arith.constant 0 : index
    %2 = vector.load %arg3[%c0_3, %c0_4] : memref<4x128xf32, #tpu.memory_space<vmem>>, vector<1x128xf32>
    %3 = vector.broadcast %1 : vector<1x128xf32> to vector<4x128xf32>
    %4 = arith.mulf %0, %3 : vector<4x128xf32>
    %5 = vector.broadcast %2 : vector<1x128xf32> to vector<4x128xf32>
    %6 = arith.addf %4, %5 : vector<4x128xf32>
    %c0_5 = arith.constant 0 : index
    %c0_6 = arith.constant 0 : index
    %7 = vector.load %arg4[%c0_5, %c0_6] : memref<4x128xf32, #tpu.memory_space<vmem>>, vector<4x128xf32>
    tpu.vector_store %arg4[%c0_5, %c0_6], %6 {strides = array<i32>} : memref<4x128xf32, #tpu.memory_space<vmem>>, vector<4x128xf32>,
    %c1 = arith.constant 1 : index
    %c0_7 = arith.constant 0 : index
    %8 = vector.load %arg2[%c1, %c0_7] : memref<4x128xf32, #tpu.memory_space<vmem>>, vector<1x128xf32>
    %c1_8 = arith.constant 1 : index
    %c0_9 = arith.constant 0 : index
    %9 = vector.load %arg3[%c1_8, %c0_9] : memref<4x128xf32, #tpu.memory_space<vmem>>, vector<1x128xf32>
    %10 = vector.broadcast %8 : vector<1x128xf32> to vector<4x128xf32>
    %11 = arith.mulf %0, %10 : vector<4x128xf32>
    %12 = vector.broadcast %9 : vector<1x128xf32> to vector<4x128xf32>
    %13 = arith.addf %11, %12 : vector<4x128xf32>
    %c0_10 = arith.constant 0 : index
    %c0_11 = arith.constant 0 : index
    %14 = vector.load %arg5[%c0_10, %c0_11] : memref<4x128xf32, #tpu.memory_space<vmem>>, vector<4x128xf32>
    tpu.vector_store %arg5[%c0_10, %c0_11], %13 {strides = array<i32>} : memref<4x128xf32, #tpu.memory_space<vmem>>, vector<4x128xf32>,
    %c2 = arith.constant 2 : index
    %c0_12 = arith.constant 0 : index
    %15 = vector.load %arg2[%c2, %c0_12] : memref<4x128xf32, #tpu.memory_space<vmem>>, vector<1x128xf32>
    %c2_13 = arith.constant 2 : index
    %c0_14 = arith.constant 0 : index
    %16 = vector.load %arg3[%c2_13, %c0_14] : memref<4x128xf32, #tpu.memory_space<vmem>>, vector<1x128xf32>
    %17 = vector.broadcast %15 : vector<1x128xf32> to vector<4x128xf32>
    %18 = arith.mulf %0, %17 : vector<4x128xf32>
    %19 = vector.broadcast %16 : vector<1x128xf32> to vector<4x128xf32>
    %20 = arith.addf %18, %19 : vector<4x128xf32>
    %c0_15 = arith.constant 0 : index
    %c0_16 = arith.constant 0 : index
    %21 = vector.load %arg6[%c0_15, %c0_16] : memref<4x128xf32, #tpu.memory_space<vmem>>, vector<4x128xf32>
    tpu.vector_store %arg6[%c0_15, %c0_16], %20 {strides = array<i32>} : memref<4x128xf32, #tpu.memory_space<vmem>>, vector<4x128xf32>,
    %c3 = arith.constant 3 : index
    %c0_17 = arith.constant 0 : index
    %22 = vector.load %arg2[%c3, %c0_17] : memref<4x128xf32, #tpu.memory_space<vmem>>, vector<1x128xf32>
    %c3_18 = arith.constant 3 : index
    %c0_19 = arith.constant 0 : index
    %23 = vector.load %arg3[%c3_18, %c0_19] : memref<4x128xf32, #tpu.memory_space<vmem>>, vector<1x128xf32>
    %24 = vector.broadcast %22 : vector<1x128xf32> to vector<4x128xf32>
    %25 = arith.mulf %0, %24 : vector<4x128xf32>
    %26 = vector.broadcast %23 : vector<1x128xf32> to vector<4x128xf32>
    %27 = arith.addf %25, %26 : vector<4x128xf32>
    %c0_20 = arith.constant 0 : index
    %c0_21 = arith.constant 0 : index
    %28 = vector.load %arg7[%c0_20, %c0_21] : memref<4x128xf32, #tpu.memory_space<vmem>>, vector<4x128xf32>
    tpu.vector_store %arg7[%c0_20, %c0_21], %27 {strides = array<i32>} : memref<4x128xf32, #tpu.memory_space<vmem>>, vector<4x128xf32>,
    return
  }
  func.func @transform_0(%arg0: i32) -> (i32, i32) {
    %c0_i32 = arith.constant 0 : i32
    %c0_i32_0 = arith.constant 0 : i32
    return %arg0, %c0_i32 : i32, i32
  }
  func.func @transform_1(%arg0: i32) -> (i32, i32) {
    %c0_i32 = arith.constant 0 : i32
    %c0_i32_0 = arith.constant 0 : i32
    %c0_i32_1 = arith.constant 0 : i32
    return %c0_i32, %c0_i32_0 : i32, i32
  }
  func.func @transform_2(%arg0: i32) -> (i32, i32) {
    %c0_i32 = arith.constant 0 : i32
    %c0_i32_0 = arith.constant 0 : i32
    %c0_i32_1 = arith.constant 0 : i32
    return %c0_i32, %c0_i32_0 : i32, i32
  }
  func.func @transform_3(%arg0: i32) -> (i32, i32) {
    %c0_i32 = arith.constant 0 : i32
    %c0_i32_0 = arith.constant 0 : i32
    return %arg0, %c0_i32 : i32, i32
  }
  func.func @transform_4(%arg0: i32) -> (i32, i32) {
    %c0_i32 = arith.constant 0 : i32
    %c0_i32_0 = arith.constant 0 : i32
    return %arg0, %c0_i32 : i32, i32
  }
  func.func @transform_5(%arg0: i32) -> (i32, i32) {
    %c0_i32 = arith.constant 0 : i32
    %c0_i32_0 = arith.constant 0 : i32
    return %arg0, %c0_i32 : i32, i32
  }
  func.func @transform_6(%arg0: i32) -> (i32, i32) {
    %c0_i32 = arith.constant 0 : i32
    %c0_i32_0 = arith.constant 0 : i32
    return %arg0, %c0_i32 : i32, i32
  }
}

</mosaic_0001>

<llo_original>
// kernel: tpu_custom_call.1
$region0: #{tpu_custom_call.1}
  #allocation0 [shape = 'u32[]', space=smem, size = 0x4, offset = 0x4, fixed_abs, tag = 'smem constant byte address 0x4 - core index']
  #allocation1 [shape = 'u32[144,128]{1,0:T(1,128)}', space=vmem, size = 0x12000, scoped, tag = 'internal scratch']
  %s0 = inlined_call_operand.hbm [shape: f32[4,128], index: 0, kind: input, shape index: {}]
  %s1 = inlined_call_operand.hbm [shape: f32[4,128], index: 1, kind: input, shape index: {}]
  %s2 = inlined_call_operand.vmem [shape: f32[4,128], index: 2, kind: input, shape index: {}]
  %s3 = inlined_call_operand.hbm [shape: f32[4,128], index: 3, kind: output, shape index: {0}]
  %s4 = inlined_call_operand.hbm [shape: f32[4,128], index: 4, kind: output, shape index: {1}]
  %s5 = inlined_call_operand.hbm [shape: f32[4,128], index: 5, kind: output, shape index: {2}]
  %s6 = inlined_call_operand.hbm [shape: f32[4,128], index: 6, kind: output, shape index: {3}]
  %7 = xla_tuple %s3, %s4, %s5, %s6
  %s8 = sld [smem:[#allocation0]]
  $region54: #{tpu_custom_call.1} parent=0
    _
  %s10 = ssub.s32 1, %s8
  %s11 = scalar_select 0, %s10, %s8
  $region1: #{tpu_custom_call.1} parent=0
    #allocation2 [shape = 'u8[2048]{0}', space=vmem, size = 0x800, scoped, tag = 'input window, operand 0, single buffered']
    #allocation3 [shape = 's32[1]{0}', space=sflag, size = 0x4, scoped, tag = 'scoped memory for tpu_custom_call.1']
    #allocation4 [shape = 's32[1]{0}', space=sflag, size = 0x4, scoped, tag = 'scoped memory for tpu_custom_call.1']
    #allocation5 [shape = 'u8[2048]{0}', space=vmem, size = 0x800, scoped, tag = 'input window, operand 1, single buffered']
    #allocation6 [shape = 's32[1]{0}', space=sflag, size = 0x4, scoped, tag = 'scoped memory for tpu_custom_call.1']
    #allocation7 [shape = 'u8[2048]{0}', space=vmem, size = 0x800, scoped, tag = 'output window, operand 0, single buffered']
    #allocation8 [shape = 'u8[2048]{0}', space=vmem, size = 0x800, scoped, tag = 'output window, operand 1, single buffered']
    #allocation9 [shape = 's32[1]{0}', space=sflag, size = 0x4, scoped, tag = 'scoped memory for tpu_custom_call.1']
    #allocation10 [shape = 'u8[2048]{0}', space=vmem, size = 0x800, scoped, tag = 'output window, operand 2, single buffered']
    #allocation11 [shape = 'u8[2048]{0}', space=vmem, size = 0x800, scoped, tag = 'output window, operand 3, single buffered']
    #allocation12 [shape = 's32[1]{0}', space=sflag, size = 0x4, scoped, tag = 'scoped memory for tpu_custom_call.1']
    %12 = vsyncpa [#allocation3], 0
    %13 = vsyncpa [#allocation6], 0
    %14 = vsyncpa [#allocation4], 0
    %15 = vsyncpa [#allocation9], 0
    %16 = vsyncpa [#allocation12], 0
    // Predicated region
    $region2: #{tpu_custom_call.1} parent=1 // pred_check
      _
    $region3: #{tpu_custom_call.1} parent=1 // pred_check_branch
      %18 = sbr.rel (0) target = $region5
    $region4: #{tpu_custom_call.1} parent=1 // pred_region
      %s20 = ssub.s32 64, 64
      %21 = vsyncadd [#allocation3], %s20
      %s23 = sshll.u32 [#allocation2], 4
      %s24 = int_to_ptr.vmem [resolvable:$true] %s23
      %26 = dma.hbm_to_vmem [thread:$0]  %s0, 64, %s24, [#allocation3]
    $region5: #{tpu_custom_call.1} parent=1 // pred_fallthru
      _
    // Predicated region
    $region6: #{tpu_custom_call.1} parent=1 // pred_check
      _
    $region7: #{tpu_custom_call.1} parent=1 // pred_check_branch
      %28 = sbr.rel (0) target = $region9
    $region8: #{tpu_custom_call.1} parent=1 // pred_region
      %s30 = ssub.s32 64, 64
      %31 = vsyncadd [#allocation6], %s30
      %s33 = sshll.u32 [#allocation5], 4
      %s34 = int_to_ptr.vmem [resolvable:$true] %s33
      %36 = dma.hbm_to_vmem [thread:$0]  %s1, 64, %s34, [#allocation6]
    $region9: #{tpu_custom_call.1} parent=1 // pred_fallthru
      _
    // Predicated region
    $region10: #{tpu_custom_call.1} parent=1 // pred_check
      _
    $region11: #{tpu_custom_call.1} parent=1 // pred_check_branch
      %38 = sbr.rel (0) target = $region13
    $region12: #{tpu_custom_call.1} parent=1 // pred_region
      _
    $region13: #{tpu_custom_call.1} parent=1 // pred_fallthru
      _
    // Predicated region
    $region14: #{tpu_custom_call.1} parent=1 // pred_check
      _
    $region15: #{tpu_custom_call.1} parent=1 // pred_check_branch
      %40 = sbr.rel (0) target = $region17
    $region16: #{tpu_custom_call.1} parent=1 // pred_region
      %41 = dma.done [#allocation3], 64
    $region17: #{tpu_custom_call.1} parent=1 // pred_fallthru
      _
    // Predicated region
    $region18: #{tpu_custom_call.1} parent=1 // pred_check
      _
    $region19: #{tpu_custom_call.1} parent=1 // pred_check_branch
      %43 = sbr.rel (0) target = $region21
    $region20: #{tpu_custom_call.1} parent=1 // pred_region
      %44 = dma.done [#allocation6], 64
    $region21: #{tpu_custom_call.1} parent=1 // pred_fallthru
      _
    %v45 = vld [vmem:[#allocation2] sm:$0xf]
    %v46 = vld [vmem:[#allocation5] sm:$0x1]
    %v47 = vld [vmem:[%s2] sm:$0x1]
    %v48 = vlaneseq
    %v49 = vshrl.u32 %v48, 7
    %v50 = vsub.s32 0, %v49
    %v51 = vrot.slane %v46, %v50
    %v52 = vmul.f32 %v45, %v51
    %v53 = vlaneseq
    %v54 = vshrl.u32 %v53, 7
    %v55 = vsub.s32 0, %v54
    %v56 = vrot.slane %v47, %v55
    %v57 = vadd.f32 %v52, %v56
    %58 = vst [vmem:[#allocation7] sm:$0xf] %v57
    %v59 = vld [vmem:[#allocation5 + $0x1] sm:$0x1]
    %v60 = vld [vmem:[%s2 + $0x1] sm:$0x1]
    %v61 = vlaneseq
    %v62 = vshrl.u32 %v61, 7
    %v63 = vsub.s32 0, %v62
    %v64 = vrot.slane %v59, %v63
    %v65 = vmul.f32 %v45, %v64
    %v66 = vlaneseq
    %v67 = vshrl.u32 %v66, 7
    %v68 = vsub.s32 0, %v67
    %v69 = vrot.slane %v60, %v68
    %v70 = vadd.f32 %v65, %v69
    %71 = vst [vmem:[#allocation8] sm:$0xf] %v70
    %v72 = vld [vmem:[#allocation5 + $0x2] sm:$0x1]
    %v73 = vld [vmem:[%s2 + $0x2] sm:$0x1]
    %v74 = vlaneseq
    %v75 = vshrl.u32 %v74, 7
    %v76 = vsub.s32 0, %v75
    %v77 = vrot.slane %v72, %v76
    %v78 = vmul.f32 %v45, %v77
    %v79 = vlaneseq
    %v80 = vshrl.u32 %v79, 7
    %v81 = vsub.s32 0, %v80
    %v82 = vrot.slane %v73, %v81
    %v83 = vadd.f32 %v78, %v82
    %84 = vst [vmem:[#allocation10] sm:$0xf] %v83
    %v85 = vld [vmem:[#allocation5 + $0x3] sm:$0x1]
    %v86 = vld [vmem:[%s2 + $0x3] sm:$0x1]
    %v87 = vlaneseq
    %v88 = vshrl.u32 %v87, 7
    %v89 = vsub.s32 0, %v88
    %v90 = vrot.slane %v85, %v89
    %v91 = vmul.f32 %v45, %v90
    %v92 = vlaneseq
    %v93 = vshrl.u32 %v92, 7
    %v94 = vsub.s32 0, %v93
    %v95 = vrot.slane %v86, %v94
    %v96 = vadd.f32 %v91, %v95
    %97 = vst [vmem:[#allocation11] sm:$0xf] %v96
    // Predicated region
    $region22: #{tpu_custom_call.1} parent=1 // pred_check
      _
    $region23: #{tpu_custom_call.1} parent=1 // pred_check_branch
      %99 = sbr.rel (0) target = $region25
    $region24: #{tpu_custom_call.1} parent=1 // pred_region
      %s101 = ssub.s32 64, 64
      %102 = vsyncadd [#allocation4], %s101
      %s104 = sshll.u32 [#allocation7], 4
      %s105 = int_to_ptr.vmem [resolvable:$true] %s104
      %107 = dma.vmem_to_hbm [thread:$0]  %s105, 64, %s3, [#allocation4]
    $region25: #{tpu_custom_call.1} parent=1 // pred_fallthru
      _
    // Predicated region
    $region26: #{tpu_custom_call.1} parent=1 // pred_check
      _
    $region27: #{tpu_custom_call.1} parent=1 // pred_check_branch
      %109 = sbr.rel (0) target = $region29
    $region28: #{tpu_custom_call.1} parent=1 // pred_region
      %s111 = ssub.s32 64, 64
      %112 = vsyncadd [#allocation9], %s111
      %s114 = sshll.u32 [#allocation8], 4
      %s115 = int_to_ptr.vmem [resolvable:$true] %s114
      %117 = dma.vmem_to_hbm [thread:$0]  %s115, 64, %s4, [#allocation9]
    $region29: #{tpu_custom_call.1} parent=1 // pred_fallthru
      _
    // Predicated region
    $region30: #{tpu_custom_call.1} parent=1 // pred_check
      _
    $region31: #{tpu_custom_call.1} parent=1 // pred_check_branch
      %119 = sbr.rel (0) target = $region33
    $region32: #{tpu_custom_call.1} parent=1 // pred_region
      %s121 = ssub.s32 64, 64
      %122 = vsyncadd [#allocation9], %s121
      %s124 = sshll.u32 [#allocation10], 4
      %s125 = int_to_ptr.vmem [resolvable:$true] %s124
      %127 = dma.vmem_to_hbm [thread:$0]  %s125, 64, %s5, [#allocation9]
    $region33: #{tpu_custom_call.1} parent=1 // pred_fallthru
      _
    // Predicated region
    $region34: #{tpu_custom_call.1} parent=1 // pred_check
      _
    $region35: #{tpu_custom_call.1} parent=1 // pred_check_branch
      %129 = sbr.rel (0) target = $region37
    $region36: #{tpu_custom_call.1} parent=1 // pred_region
      %s131 = ssub.s32 64, 64
      %132 = vsyncadd [#allocation12], %s131
      %s134 = sshll.u32 [#allocation11], 4
      %s135 = int_to_ptr.vmem [resolvable:$true] %s134
      %137 = dma.vmem_to_hbm [thread:$0]  %s135, 64, %s6, [#allocation12]
    $region37: #{tpu_custom_call.1} parent=1 // pred_fallthru
      _
    // Predicated region
    $region38: #{tpu_custom_call.1} parent=1 // pred_check
      _
    $region39: #{tpu_custom_call.1} parent=1 // pred_check_branch
      %139 = sbr.rel (0) target = $region41
    $region40: #{tpu_custom_call.1} parent=1 // pred_region
      %140 = dma.done [#allocation4], 64
    $region41: #{tpu_custom_call.1} parent=1 // pred_fallthru
      _
    // Predicated region
    $region42: #{tpu_custom_call.1} parent=1 // pred_check
      _
    $region43: #{tpu_custom_call.1} parent=1 // pred_check_branch
      %142 = sbr.rel (0) target = $region45
    $region44: #{tpu_custom_call.1} parent=1 // pred_region
      %143 = dma.done [#allocation9], 64
    $region45: #{tpu_custom_call.1} parent=1 // pred_fallthru
      _
    // Predicated region
    $region46: #{tpu_custom_call.1} parent=1 // pred_check
      _
    $region47: #{tpu_custom_call.1} parent=1 // pred_check_branch
      %145 = sbr.rel (0) target = $region49
    $region48: #{tpu_custom_call.1} parent=1 // pred_region
      %146 = dma.done [#allocation9], 64
    $region49: #{tpu_custom_call.1} parent=1 // pred_fallthru
      _
    // Predicated region
    $region50: #{tpu_custom_call.1} parent=1 // pred_check
      _
    $region51: #{tpu_custom_call.1} parent=1 // pred_check_branch
      %148 = sbr.rel (0) target = $region53
    $region52: #{tpu_custom_call.1} parent=1 // pred_region
      %149 = dma.done [#allocation12], 64
    $region53: #{tpu_custom_call.1} parent=1 // pred_fallthru
      _
    %150 = vsyncpa [#allocation3], 1
    %151 = vsyncpa [#allocation6], 1
    %152 = vsyncpa [#allocation4], 1
    %153 = vsyncpa [#allocation9], 1
    %154 = vsyncpa [#allocation12], 1

</llo_original>
